<compile_context>
chip_gen: v7x
topology: tpu7x:2x2x1
jax: 0.10.0
libtpu: 0.0.40
codegen_flags: <defaults>
</compile_context>

<pallas_src>
import math

import jax
import jax.numpy as jnp
from jax.experimental import pallas as pl
from jax.experimental.pallas import tpu as pltpu

BN_EPS = 1e-5
GUMBEL_EPS = 1e-20
LOG_2PI = math.log(2.0 * math.pi)
VMEM_LIMIT_BYTES = 32 * 1024 * 1024  # explicit scoped-VMEM budget (safe on v5e/v6e/v7x)


# ---------------------------------------------------------------------------
# Kernels
# ---------------------------------------------------------------------------

def _mlp3_tanh_kernel(x_ref, w1_ref, b1_ref, w2_ref, b2_ref, w3_ref, b3_ref, o_ref):
    """fc1 -> tanh -> fc2 -> tanh -> fc3   (eval-mode BatchNorm pre-folded into fc3).

    Dropout is identity in eval mode. tanh is always applied to the f32 MXU
    accumulator (important for v5e, which has no bf16 VPU/EUP datapath); the
    downcast (if weights are bf16) happens only on the matmul inputs.
    """
    x = x_ref[...].astype(w1_ref.dtype)
    h = jnp.tanh(jnp.dot(x, w1_ref[...], preferred_element_type=jnp.float32)
                 + b1_ref[...])
    h = jnp.tanh(jnp.dot(h.astype(w2_ref.dtype), w2_ref[...],
                         preferred_element_type=jnp.float32) + b2_ref[...])
    y = (jnp.dot(h.astype(w3_ref.dtype), w3_ref[...],
                 preferred_element_type=jnp.float32) + b3_ref[...])
    o_ref[...] = y.astype(o_ref.dtype)


def _gumbel_softmax_kernel(logits_ref, noise_ref, inv_temp_ref, z_ref):
    """Soft gumbel-softmax over the categorical (last) axis of a (tb, L, C) block."""
    y = (logits_ref[...] + noise_ref[...]) * inv_temp_ref[0]
    y = y - jnp.max(y, axis=-1, keepdims=True)
    e = jnp.exp(y)
    z_ref[...] = (e / jnp.sum(e, axis=-1, keepdims=True)).astype(z_ref.dtype)


def _decoder_logdensity_kernel(z_ref, x_ref, w1_ref, b1_ref, w2_ref, b2_ref,
                               w3mu_ref, b3mu_ref, w3lv_ref, b3lv_ref, ld_ref):
    """decoder MLP (BN folded, head split into mu / logvar columns) + Normal log-prob.

    The decoder's out_fc + out_bn were split column-wise at param-prep time so the
    mu/logvar "view(-1, 2, D)" split needs no in-kernel lane slicing.
    """
    z = z_ref[...].astype(w1_ref.dtype)
    h = jnp.tanh(jnp.dot(z, w1_ref[...], preferred_element_type=jnp.float32)
                 + b1_ref[...])
    h = jnp.tanh(jnp.dot(h.astype(w2_ref.dtype), w2_ref[...],
                         preferred_element_type=jnp.float32) + b2_ref[...])
    h = h.astype(w3mu_ref.dtype)
    mu = jnp.dot(h, w3mu_ref[...], preferred_element_type=jnp.float32) + b3mu_ref[...]
    logvar = jnp.dot(h, w3lv_ref[...], preferred_element_type=jnp.float32) + b3lv_ref[...]
    x = x_ref[...].astype(jnp.float32)
    diff = x - mu
    # -0.5*log(2*pi*var) - (x-mu)^2/(2*var)  with var = exp(logvar)
    ld = -0.5 * (LOG_2PI + logvar) - 0.5 * diff * diff * jnp.exp(-logvar)
    ld_ref[...] = ld.astype(ld_ref.dtype)


# ---------------------------------------------------------------------------
# pallas_call wrappers
# ---------------------------------------------------------------------------

def _round_up(n, m):
    return ((n + m - 1) // m) * m


def _full_spec(shape):
    """Whole-array block, replicated across the (batch) grid axis."""
    nd = len(shape)
    return pl.BlockSpec(shape, lambda *_: (0,) * nd)


def _compiler_params():
    return pltpu.CompilerParams(dimension_semantics=("parallel",),
                                vmem_limit_bytes=VMEM_LIMIT_BYTES)


def _mlp3_forward(x, w1, b1, w2, b2, w3, b3, *, batch_tile):
    B, D_in = x.shape
    H1, H2, D_out = w1.shape[1], w2.shape[1], w3.shape[1]
    tb = batch_tile
    assert B % tb == 0
    grid = (B // tb,)

    flops = int(2 * B * (D_in * H1 + H1 * H2 + H2 * D_out))
    trans = int(B * (H1 + H2))
    bytes_accessed = int(x.size * x.dtype.itemsize + B * D_out * 4
                         + sum(int(a.size) * a.dtype.itemsize
                               for a in (w1, b1, w2, b2, w3, b3)))

    return pl.pallas_call(
        _mlp3_tanh_kernel,
        out_shape=jax.ShapeDtypeStruct((B, D_out), jnp.float32),
        grid_spec=pltpu.PrefetchScalarGridSpec(
            num_scalar_prefetch=0,
            grid=grid,
            in_specs=[
                pl.BlockSpec((tb, D_in), lambda i: (i, 0)),   # streamed activations
                _full_spec(w1.shape), _full_spec(b1.shape),
                _full_spec(w2.shape), _full_spec(b2.shape),
                _full_spec(w3.shape), _full_spec(b3.shape),
            ],
            out_specs=pl.BlockSpec((tb, D_out), lambda i: (i, 0)),
        ),
        compiler_params=_compiler_params(),
        cost_estimate=pl.CostEstimate(flops=flops, transcendentals=trans,
                                      bytes_accessed=bytes_accessed),
    )(x, w1, b1, w2, b2, w3, b3)


def _gumbel_softmax_call(logits2d, noise3d, inv_temp, latent, categorical, *, batch_tile):
    B = logits2d.shape[0]
    L, C = latent, categorical
    logits3 = logits2d.reshape(B, L, C)
    tb = batch_tile
    assert B % tb == 0
    grid = (B // tb,)
    inv_temp_arr = jnp.asarray(inv_temp, jnp.float32).reshape(1)

    z3 = pl.pallas_call(
        _gumbel_softmax_kernel,
        out_shape=jax.ShapeDtypeStruct((B, L, C), jnp.float32),
        grid_spec=pltpu.PrefetchScalarGridSpec(
            num_scalar_prefetch=0,
            grid=grid,
            in_specs=[
                pl.BlockSpec((tb, L, C), lambda i: (i, 0, 0)),
                pl.BlockSpec((tb, L, C), lambda i: (i, 0, 0)),
                pl.BlockSpec(memory_space=pltpu.MemorySpace.SMEM),  # 1/temperature
            ],
            out_specs=pl.BlockSpec((tb, L, C), lambda i: (i, 0, 0)),
        ),
        compiler_params=_compiler_params(),
        cost_estimate=pl.CostEstimate(flops=int(6 * B * L * C),
                                      transcendentals=int(B * L * C),
                                      bytes_accessed=int(3 * B * L * C * 4 + 4)),
    )(logits3, noise3d, inv_temp_arr)
    return z3.reshape(B, L * C)


def _decoder_logdensity(z, x, w1, b1, w2, b2, w3mu, b3mu, w3lv, b3lv, *, batch_tile):
    B, LC = z.shape
    _, D = x.shape
    H1, H2 = w1.shape[1], w2.shape[1]
    tb = batch_tile
    assert B % tb == 0
    grid = (B // tb,)

    flops = int(2 * B * (LC * H1 + H1 * H2 + 2 * H2 * D) + 8 * B * D)
    trans = int(B * (H1 + H2 + D))
    bytes_accessed = int(sum(int(a.size) * a.dtype.itemsize for a in
                             (z, x, w1, b1, w2, b2, w3mu, b3mu, w3lv, b3lv))
                         + B * D * 4)

    return pl.pallas_call(
        _decoder_logdensity_kernel,
        out_shape=jax.ShapeDtypeStruct((B, D), jnp.float32),
        grid_spec=pltpu.PrefetchScalarGridSpec(
            num_scalar_prefetch=0,
            grid=grid,
            in_specs=[
                pl.BlockSpec((tb, LC), lambda i: (i, 0)),     # z (streamed)
                pl.BlockSpec((tb, D), lambda i: (i, 0)),      # x (streamed)
                _full_spec(w1.shape), _full_spec(b1.shape),
                _full_spec(w2.shape), _full_spec(b2.shape),
                _full_spec(w3mu.shape), _full_spec(b3mu.shape),
                _full_spec(w3lv.shape), _full_spec(b3lv.shape),
            ],
            out_specs=pl.BlockSpec((tb, D), lambda i: (i, 0)),
        ),
        compiler_params=_compiler_params(),
        cost_estimate=pl.CostEstimate(flops=flops, transcendentals=trans,
                                      bytes_accessed=bytes_accessed),
    )(z, x, w1, b1, w2, b2, w3mu, b3mu, w3lv, b3lv)


# ---------------------------------------------------------------------------
# Parameter construction / preparation (BN fold happens here, once, off the hot path)
# ---------------------------------------------------------------------------

def _init_nn_params(key, in_size, hidden, out_size):
    """PyTorch-Linear-style uniform init; BN with synthetic running stats (eval mode)."""
    ks = jax.random.split(key, 8)

    def linear(kw, kb, fan_in, fan_out):
        bound = 1.0 / math.sqrt(fan_in)
        w = jax.random.uniform(kw, (fan_in, fan_out), jnp.float32, -bound, bound)
        b = jax.random.uniform(kb, (fan_out,), jnp.float32, -bound, bound)
        return w, b

    w1, b1 = linear(ks[0], ks[1], in_size, hidden[0])
    w2, b2 = linear(ks[2], ks[3], hidden[0], hidden[1])
    w3, b3 = linear(ks[4], ks[5], hidden[1], out_size)
    return dict(
        w1=w1, b1=b1, w2=w2, b2=b2, w3=w3, b3=b3,
        gamma=jnp.ones((out_size,), jnp.float32),
        beta=jnp.zeros((out_size,), jnp.float32),
        rmean=0.1 * jax.random.normal(ks[6], (out_size,), jnp.float32),
        rvar=jax.random.uniform(ks[7], (out_size,), jnp.float32, 0.5, 1.5),
    )


def init_gaussian_vae_params(key, input_size, latent_size, categorical_size, encode_hidden):
    k_enc, k_dec = jax.random.split(key)
    enc = _init_nn_params(k_enc, input_size, encode_hidden, latent_size * categorical_size)
    dec = _init_nn_params(k_dec, latent_size * categorical_size,
                          tuple(reversed(encode_hidden)), input_size * 2)
    return dict(encoder=enc, decoder=dec, input_size=input_size,
                latent_size=latent_size, categorical_size=categorical_size)


def prepare_gaussian_vae_params(raw, *, compute_dtype=jnp.float32):
    """Fold eval-mode BatchNorm1d into the last Linear of each MLP; split the
    decoder head into mu / logvar halves; optionally cast weights to bf16."""
    d_in = raw["input_size"]

    def fold(p):
        scale = p["gamma"] * jax.lax.rsqrt(p["rvar"] + BN_EPS)
        w3f = p["w3"] * scale[None, :]
        b3f = (p["b3"] - p["rmean"]) * scale + p["beta"]
        return w3f, b3f

    def cw(w):   # matmul operands (may be bf16)
        return w.astype(compute_dtype)

    def row(b):  # biases stay f32 and broadcast over the batch (sublane) axis
        return b.reshape(1, -1).astype(jnp.float32)

    enc = raw["encoder"]
    ew3, eb3 = fold(enc)
    enc_params = (cw(enc["w1"]), row(enc["b1"]),
                  cw(enc["w2"]), row(enc["b2"]),
                  cw(ew3), row(eb3))

    dec = raw["decoder"]
    dw3, db3 = fold(dec)
    dec_params = (cw(dec["w1"]), row(dec["b1"]),
                  cw(dec["w2"]), row(dec["b2"]),
                  cw(dw3[:, :d_in]), row(db3[:d_in]),       # mu head
                  cw(dw3[:, d_in:]), row(db3[d_in:]))       # logvar head

    return dict(encoder=enc_params, decoder=dec_params, input_size=d_in,
                latent_size=raw["latent_size"], categorical_size=raw["categorical_size"])


def _choose_batch_tile(B, requested=None):
    """Default 256 rows (multiple of 8): big enough to amortize per-grid-step
    overhead, small enough that the streamed blocks stay far under the scoped
    VMEM budget and large batches get >=2 grid steps (v7x megacore)."""
    if requested is not None:
        assert requested % 8 == 0
        return requested
    return min(256, _round_up(B, 8))


# ---------------------------------------------------------------------------
# Full GaussianVAE forward
# ---------------------------------------------------------------------------

def gaussian_vae_forward(x, temp, prepared, key, *, batch_tile=None):
    """Returns (z, log_density), matching GaussianVAE.forward in eval mode."""
    B, _ = x.shape
    L = prepared["latent_size"]
    C = prepared["categorical_size"]

    tb = _choose_batch_tile(B, batch_tile)
    Bp = _round_up(B, tb)
    xp = x if Bp == B else jnp.pad(x, ((0, Bp - B), (0, 0)))

    # encoder MLP (BN folded)
    q = _mlp3_forward(xp, *prepared["encoder"], batch_tile=tb)

    # gumbel noise (same formula as sample_gumbel in the torch code)
    u = jax.random.uniform(key, (B, L, C), jnp.float32)
    g = -jnp.log(-jnp.log(u + GUMBEL_EPS) + GUMBEL_EPS)
    if Bp != B:
        g = jnp.pad(g, ((0, Bp - B), (0, 0), (0, 0)))

    # gumbel-softmax over the categorical axis (soft / hard=False path)
    z = _gumbel_softmax_call(q, g, 1.0 / temp, L, C, batch_tile=tb)

    # decoder MLP (BN folded, head split) fused with the Normal log-density
    log_density = _decoder_logdensity(z, xp, *prepared["decoder"], batch_tile=tb)

    if Bp != B:
        z = z[:B]
        log_density = log_density[:B]
    return z, log_density


# ---------------------------------------------------------------------------
# Pure-JAX reference (mirrors the PyTorch module, eval mode) + demo
# ---------------------------------------------------------------------------

def _reference_forward(x, temp, raw, key):
    def nn_eval(p, h):
        h = jnp.tanh(h @ p["w1"] + p["b1"])
        h = jnp.tanh(h @ p["w2"] + p["b2"])
        h = h @ p["w3"] + p["b3"]
        scale = p["gamma"] / jnp.sqrt(p["rvar"] + BN_EPS)
        return (h - p["rmean"]) * scale + p["beta"]

    B = x.shape[0]
    L, C, D = raw["latent_size"], raw["categorical_size"], raw["input_size"]
    q = nn_eval(raw["encoder"], x)
    u = jax.random.uniform(key, (B, L, C), jnp.float32)
    g = -jnp.log(-jnp.log(u + GUMBEL_EPS) + GUMBEL_EPS)
    y = (q.reshape(B, L, C) + g) / temp
    z = jax.nn.softmax(y, axis=-1).reshape(B, L * C)
    dec = nn_eval(raw["decoder"], z)
    mu, logvar = dec[:, :D], dec[:, D:]
    var = jnp.exp(logvar)
    log_density = -0.5 * jnp.log(2.0 * jnp.pi * var) - (x - mu) ** 2 / (2.0 * var)
    return z, log_density


if __name__ == "__main__":
    # Small shapes: GaussianVAE(input_size=32, latent_size=4, categorical_size=8,
    #                           encode_hidden=[64, 48], d_prob=0.1, acts='tanh')
    input_size, latent_size, categorical_size = 32, 4, 8
    encode_hidden = (64, 48)
    batch = 8
    temp = 0.5

    key = jax.random.PRNGKey(0)
    kx, kp, kg = jax.random.split(key, 3)
    x = jax.random.normal(kx, (batch, input_size), jnp.float32)

    raw = init_gaussian_vae_params(kp, input_size, latent_size, categorical_size,
                                   encode_hidden)
    prepared = prepare_gaussian_vae_params(raw, compute_dtype=jnp.float32)

    z, log_density = gaussian_vae_forward(x, temp, prepared, kg)
    z = jax.block_until_ready(z)
    log_density = jax.block_until_ready(log_density)

    # sanity vs. pure-JAX reference of the same eval-mode forward
    z_ref, ld_ref = _reference_forward(x, temp, raw, kg)
    assert z.shape == (batch, latent_size * categorical_size)
    assert log_density.shape == (batch, input_size)
    assert jnp.allclose(z, z_ref, atol=1e-3, rtol=1e-3), "z mismatch vs reference"
    assert jnp.allclose(log_density, ld_ref, atol=1e-3, rtol=1e-3), \
        "log_density mismatch vs reference"

    print("KERNEL_OK")
</pallas_src>

<mosaic_0001>
module attributes {stable_mosaic.version = 11 : i64} {
  func.func @_mlp3_tanh_kernel(%arg0: i32, %arg1: memref<8x32xf32, #tpu.memory_space<vmem>>, %arg2: memref<32x64xf32, #tpu.memory_space<vmem>>, %arg3: memref<1x64xf32, #tpu.memory_space<vmem>>, %arg4: memref<64x48xf32, #tpu.memory_space<vmem>>, %arg5: memref<1x48xf32, #tpu.memory_space<vmem>>, %arg6: memref<48x32xf32, #tpu.memory_space<vmem>>, %arg7: memref<1x32xf32, #tpu.memory_space<vmem>>, %arg8: memref<8x32xf32, #tpu.memory_space<vmem>>) attributes {dimension_semantics = [#tpu.dimension_semantics<parallel>], iteration_bounds = array<i64: 1>, scalar_prefetch = 0 : i64, scratch_operands = 0 : i64, tpu.core_type = #tpu.core_type<tc>, window_params = [{transform_indices = @transform_0, window_bounds = array<i64: 8, 32>}, {pipeline_mode = #tpu.pipeline_mode<synchronous>, transform_indices = @transform_1, window_bounds = array<i64: 32, 64>}, {pipeline_mode = #tpu.pipeline_mode<synchronous>, transform_indices = @transform_2, window_bounds = array<i64: 1, 64>}, {pipeline_mode = #tpu.pipeline_mode<synchronous>, transform_indices = @transform_3, window_bounds = array<i64: 64, 48>}, {pipeline_mode = #tpu.pipeline_mode<synchronous>, transform_indices = @transform_4, window_bounds = array<i64: 1, 48>}, {pipeline_mode = #tpu.pipeline_mode<synchronous>, transform_indices = @transform_5, window_bounds = array<i64: 48, 32>}, {pipeline_mode = #tpu.pipeline_mode<synchronous>, transform_indices = @transform_6, window_bounds = array<i64: 1, 32>}, {transform_indices = @transform_7, window_bounds = array<i64: 8, 32>}]} {
    %c0 = arith.constant 0 : index
    %c0_0 = arith.constant 0 : index
    %0 = vector.load %arg1[%c0, %c0_0] : memref<8x32xf32, #tpu.memory_space<vmem>>, vector<8x32xf32>
    %c0_1 = arith.constant 0 : index
    %c0_2 = arith.constant 0 : index
    %1 = vector.load %arg2[%c0_1, %c0_2] : memref<32x64xf32, #tpu.memory_space<vmem>>, vector<32x64xf32>
    %cst = arith.constant dense<0.000000e+00> : vector<8x64xf32>
    %2 = tpu.matmul %0, %1, %cst {dimension_numbers = #tpu.dot_dimension_numbers<[1], [0], [0], [1], [0, 0, 1, 1], [], []>} : vector<8x32xf32>, vector<32x64xf32>, vector<8x64xf32> -> vector<8x64xf32>
    %c0_3 = arith.constant 0 : index
    %c0_4 = arith.constant 0 : index
    %3 = vector.load %arg3[%c0_3, %c0_4] : memref<1x64xf32, #tpu.memory_space<vmem>>, vector<1x64xf32>
    %4 = vector.broadcast %3 : vector<1x64xf32> to vector<8x64xf32>
    %5 = arith.addf %2, %4 : vector<8x64xf32>
    %6 = math.tanh %5 : vector<8x64xf32>
    %c0_5 = arith.constant 0 : index
    %c0_6 = arith.constant 0 : index
    %7 = vector.load %arg4[%c0_5, %c0_6] : memref<64x48xf32, #tpu.memory_space<vmem>>, vector<64x48xf32>
    %cst_7 = arith.constant dense<0.000000e+00> : vector<8x48xf32>
    %8 = tpu.matmul %6, %7, %cst_7 {dimension_numbers = #tpu.dot_dimension_numbers<[1], [0], [0], [1], [0, 0, 1, 1], [], []>} : vector<8x64xf32>, vector<64x48xf32>, vector<8x48xf32> -> vector<8x48xf32>
    %c0_8 = arith.constant 0 : index
    %c0_9 = arith.constant 0 : index
    %9 = vector.load %arg5[%c0_8, %c0_9] : memref<1x48xf32, #tpu.memory_space<vmem>>, vector<1x48xf32>
    %10 = vector.broadcast %9 : vector<1x48xf32> to vector<8x48xf32>
    %11 = arith.addf %8, %10 : vector<8x48xf32>
    %12 = math.tanh %11 : vector<8x48xf32>
    %c0_10 = arith.constant 0 : index
    %c0_11 = arith.constant 0 : index
    %13 = vector.load %arg6[%c0_10, %c0_11] : memref<48x32xf32, #tpu.memory_space<vmem>>, vector<48x32xf32>
    %cst_12 = arith.constant dense<0.000000e+00> : vector<8x32xf32>
    %14 = tpu.matmul %12, %13, %cst_12 {dimension_numbers = #tpu.dot_dimension_numbers<[1], [0], [0], [1], [0, 0, 1, 1], [], []>} : vector<8x48xf32>, vector<48x32xf32>, vector<8x32xf32> -> vector<8x32xf32>
    %c0_13 = arith.constant 0 : index
    %c0_14 = arith.constant 0 : index
    %15 = vector.load %arg7[%c0_13, %c0_14] : memref<1x32xf32, #tpu.memory_space<vmem>>, vector<1x32xf32>
    %16 = vector.broadcast %15 : vector<1x32xf32> to vector<8x32xf32>
    %17 = arith.addf %14, %16 : vector<8x32xf32>
    %c0_15 = arith.constant 0 : index
    %c0_16 = arith.constant 0 : index
    %18 = vector.load %arg8[%c0_15, %c0_16] : memref<8x32xf32, #tpu.memory_space<vmem>>, vector<8x32xf32>
    tpu.vector_store %arg8[%c0_15, %c0_16], %17 {strides = array<i32>} : memref<8x32xf32, #tpu.memory_space<vmem>>, vector<8x32xf32>,
    return
  }
  func.func @transform_0(%arg0: i32) -> (i32, i32) {
    %c0_i32 = arith.constant 0 : i32
    %c0_i32_0 = arith.constant 0 : i32
    return %arg0, %c0_i32 : i32, i32
  }
  func.func @transform_1(%arg0: i32) -> (i32, i32) {
    %c0_i32 = arith.constant 0 : i32
    %c0_i32_0 = arith.constant 0 : i32
    %c0_i32_1 = arith.constant 0 : i32
    return %c0_i32, %c0_i32_0 : i32, i32
  }
  func.func @transform_2(%arg0: i32) -> (i32, i32) {
    %c0_i32 = arith.constant 0 : i32
    %c0_i32_0 = arith.constant 0 : i32
    %c0_i32_1 = arith.constant 0 : i32
    return %c0_i32, %c0_i32_0 : i32, i32
  }
  func.func @transform_3(%arg0: i32) -> (i32, i32) {
    %c0_i32 = arith.constant 0 : i32
    %c0_i32_0 = arith.constant 0 : i32
    %c0_i32_1 = arith.constant 0 : i32
    return %c0_i32, %c0_i32_0 : i32, i32
  }
  func.func @transform_4(%arg0: i32) -> (i32, i32) {
    %c0_i32 = arith.constant 0 : i32
    %c0_i32_0 = arith.constant 0 : i32
    %c0_i32_1 = arith.constant 0 : i32
    return %c0_i32, %c0_i32_0 : i32, i32
  }
  func.func @transform_5(%arg0: i32) -> (i32, i32) {
    %c0_i32 = arith.constant 0 : i32
    %c0_i32_0 = arith.constant 0 : i32
    %c0_i32_1 = arith.constant 0 : i32
    return %c0_i32, %c0_i32_0 : i32, i32
  }
  func.func @transform_6(%arg0: i32) -> (i32, i32) {
    %c0_i32 = arith.constant 0 : i32
    %c0_i32_0 = arith.constant 0 : i32
    %c0_i32_1 = arith.constant 0 : i32
    return %c0_i32, %c0_i32_0 : i32, i32
  }
  func.func @transform_7(%arg0: i32) -> (i32, i32) {
    %c0_i32 = arith.constant 0 : i32
    %c0_i32_0 = arith.constant 0 : i32
    return %arg0, %c0_i32 : i32, i32
  }
}

</mosaic_0001>

<llo_original>
// kernel: tpu_custom_call.1
$region0: #{tpu_custom_call.1}
  #allocation0 [shape = 'u32[]', space=smem, size = 0x4, offset = 0x4, fixed_abs, tag = 'smem constant byte address 0x4 - core index']
  #allocation1 [shape = 'u32[144,128]{1,0:T(1,128)}', space=vmem, size = 0x12000, scoped, tag = 'internal scratch']
  %s0 = inlined_call_operand.vmem [shape: f32[8,32], index: 0, kind: input, shape index: {}]
  %s1 = inlined_call_operand.vmem [shape: f32[32,64], index: 1, kind: input, shape index: {}]
  %s2 = inlined_call_operand.vmem [shape: f32[1,64], index: 2, kind: input, shape index: {}]
  %s3 = inlined_call_operand.vmem [shape: f32[64,48], index: 3, kind: input, shape index: {}]
  %s4 = inlined_call_operand.vmem [shape: f32[1,48], index: 4, kind: input, shape index: {}]
  %s5 = inlined_call_operand.vmem [shape: f32[48,32], index: 5, kind: input, shape index: {}]
  %s6 = inlined_call_operand.vmem [shape: f32[1,32], index: 6, kind: input, shape index: {}]
  %s7 = inlined_call_operand.hbm [shape: f32[8,32], index: 7, kind: output, shape index: {}]
  %s8 = sld [smem:[#allocation0]]
  $region38: #{tpu_custom_call.1} parent=0
    _
  %s10 = ssub.s32 1, %s8
  %s11 = scalar_select 0, %s10, %s8
  $region1: #{tpu_custom_call.1} parent=0
    #allocation2 [shape = 'u8[4096]{0}', space=vmem, size = 0x1000, scoped, tag = 'output window, operand 0, single buffered']
    #allocation3 [shape = 's32[1]{0}', space=sflag, size = 0x4, scoped, tag = 'scoped memory for tpu_custom_call.1']
    %12 = vsyncpa [#allocation3], 0
    // Predicated region
    $region2: #{tpu_custom_call.1} parent=1 // pred_check
      _
    $region3: #{tpu_custom_call.1} parent=1 // pred_check_branch
      %14 = sbr.rel (0) target = $region5
    $region4: #{tpu_custom_call.1} parent=1 // pred_region
      _
    $region5: #{tpu_custom_call.1} parent=1 // pred_fallthru
      _
    // Predicated region
    $region6: #{tpu_custom_call.1} parent=1 // pred_check
      _
    $region7: #{tpu_custom_call.1} parent=1 // pred_check_branch
      %16 = sbr.rel (0) target = $region9
    $region8: #{tpu_custom_call.1} parent=1 // pred_region
      _
    $region9: #{tpu_custom_call.1} parent=1 // pred_fallthru
      _
    // Predicated region
    $region10: #{tpu_custom_call.1} parent=1 // pred_check
      _
    $region11: #{tpu_custom_call.1} parent=1 // pred_check_branch
      %18 = sbr.rel (0) target = $region13
    $region12: #{tpu_custom_call.1} parent=1 // pred_region
      _
    $region13: #{tpu_custom_call.1} parent=1 // pred_fallthru
      _
    // Predicated region
    $region14: #{tpu_custom_call.1} parent=1 // pred_check
      _
    $region15: #{tpu_custom_call.1} parent=1 // pred_check_branch
      %20 = sbr.rel (0) target = $region17
    $region16: #{tpu_custom_call.1} parent=1 // pred_region
      _
    $region17: #{tpu_custom_call.1} parent=1 // pred_fallthru
      _
    // Predicated region
    $region18: #{tpu_custom_call.1} parent=1 // pred_check
      _
    $region19: #{tpu_custom_call.1} parent=1 // pred_check_branch
      %22 = sbr.rel (0) target = $region21
    $region20: #{tpu_custom_call.1} parent=1 // pred_region
      _
    $region21: #{tpu_custom_call.1} parent=1 // pred_fallthru
      _
    // Predicated region
    $region22: #{tpu_custom_call.1} parent=1 // pred_check
      _
    $region23: #{tpu_custom_call.1} parent=1 // pred_check_branch
      %24 = sbr.rel (0) target = $region25
    $region24: #{tpu_custom_call.1} parent=1 // pred_region
      _
    $region25: #{tpu_custom_call.1} parent=1 // pred_fallthru
      _
    // Predicated region
    $region26: #{tpu_custom_call.1} parent=1 // pred_check
      _
    $region27: #{tpu_custom_call.1} parent=1 // pred_check_branch
      %26 = sbr.rel (0) target = $region29
    $region28: #{tpu_custom_call.1} parent=1 // pred_region
      _
    $region29: #{tpu_custom_call.1} parent=1 // pred_fallthru
      _
    %v27 = vld [vmem:[%s0] sm:$0xff]
    %v28 = vld [vmem:[%s1] sm:$0xff]
    %v29 = vld [vmem:[%s1 + $0x8] sm:$0xff]
    %v30 = vld [vmem:[%s1 + $0x10] sm:$0xff]
    %v31 = vld [vmem:[%s1 + $0x18] sm:$0xff]
    %v32 = vld [vmem:[%s2] sm:$0x1]
    %v34 = vlaneseq
    %v35 = vshrl.u32 %v34, 7
    %v36 = vsub.s32 0, %v35
    %v37 = vrot.slane %v32, %v36
    %vm39 = vcmask 261120
    %v41 = vsel %vm39, %v27, 0
    %43 = vmatprep.subr.mxu0 0.0
    %44 = vmatpush1.msra.mxu0 %v28
    %45 = vmatprep.subr.mxu0 0.0
    %46 = vmatpush1.msra.mxu0 %v29
    %47 = vmatprep.subr.mxu0 0.0
    %48 = vmatpush1.msra.mxu0 %v30
    %49 = vmatprep.subr.mxu0 0.0
    %50 = vmatpush1.msra.mxu0 %v31
    %51 = vmatprep.subr.mxu0 0.0
    %52 = vmatpush1.msra.mxu0 0.0
    %53 = vmatprep.subr.mxu0 0.0
    %54 = vmatpush1.msra.mxu0 0.0
    %55 = vmatprep.subr.mxu0 0.0
    %56 = vmatpush1.msra.mxu0 0.0
    %57 = vmatprep.subr.mxu0 0.0
    %58 = vmatpush1.msra.mxu0 0.0
    %59 = vmatprep.subr.mxu0 0.0
    %60 = vmatpush1.msra.mxu0 0.0
    %61 = vmatprep.subr.mxu0 0.0
    %62 = vmatpush1.msra.mxu0 0.0
    %63 = vmatprep.subr.mxu0 0.0
    %64 = vmatpush1.msra.mxu0 0.0
    %65 = vmatprep.subr.mxu0 0.0
    %66 = vmatpush1.msra.mxu0 0.0
    %67 = vmatprep.subr.mxu0 0.0
    %68 = vmatpush1.msra.mxu0 0.0
    %69 = vmatprep.subr.mxu0 0.0
    %70 = vmatpush1.msra.mxu0 0.0
    %71 = vmatprep.subr.mxu0 0.0
    %72 = vmatpush1.msra.mxu0 0.0
    %73 = vmatprep.subr.mxu0 0.0
    %74 = vmatpush1.msra.mxu0 0.0
    %75 = vmatprep.subr.mxu0 0.0
    %76 = vmatpush1.msra.mxu0 0.0
    %77 = vmatprep.subr.mxu0 0.0
    %78 = vmatpush1.msra.mxu0 0.0
    %79 = vmatprep.subr.mxu0 0.0
    %80 = vmatpush1.msra.mxu0 0.0
    %81 = vmatprep.subr.mxu0 0.0
    %82 = vmatpush1.msra.mxu0 0.0
    %83 = vmatprep.subr.mxu0 0.0
    %84 = vmatpush1.msra.mxu0 0.0
    %85 = vmatprep.subr.mxu0 0.0
    %86 = vmatpush1.msra.mxu0 0.0
    %87 = vmatprep.subr.mxu0 0.0
    %88 = vmatpush1.msra.mxu0 0.0
    %89 = vmatprep.subr.mxu0 0.0
    %90 = vmatpush1.msra.mxu0 0.0
    %91 = vmatprep.subr.mxu0 0.0
    %92 = vmatpush1.msra.mxu0 0.0
    %93 = vmatprep.subr.mxu0 0.0
    %94 = vmatpush1.msra.mxu0 0.0
    %95 = vmatprep.subr.mxu0 0.0
    %96 = vmatpush1.msra.mxu0 0.0
    %97 = vmatprep.subr.mxu0 0.0
    %98 = vmatpush1.msra.mxu0 0.0
    %99 = vmatprep.subr.mxu0 0.0
    %100 = vmatpush1.msra.mxu0 0.0
    %101 = vmatprep.subr.mxu0 0.0
    %102 = vmatpush1.msra.mxu0 0.0
    %103 = vmatprep.subr.mxu0 0.0
    %104 = vmatpush1.msra.mxu0 0.0
    %105 = vmatprep.subr.mxu0 0.0
    %106 = vmatpush1.msra.mxu0 0.0
    %107 = vmatprep.mubr.f32.mxu0 0.0
    %108 = vmatmul.mubr.f32.gmra.mrb[0].mxu0 %v41
    %v109 = vpop.f32.mrb[0].mxu0
    %v110 = vadd.f32 %v37, %v109
    %v111 = vpop.f32.mrb[0].mxu0
    %112 = vdwg.mxu0
    %v113 = vtanh.pop %v110
    %v114 = vld [vmem:[%s3] sm:$0xff]
    %v115 = vld [vmem:[%s3 + $0x8] sm:$0xff]
    %v116 = vld [vmem:[%s3 + $0x10] sm:$0xff]
    %v117 = vld [vmem:[%s3 + $0x18] sm:$0xff]
    %v118 = vld [vmem:[%s3 + $0x20] sm:$0xff]
    %v119 = vld [vmem:[%s3 + $0x28] sm:$0xff]
    %v120 = vld [vmem:[%s3 + $0x30] sm:$0xff]
    %v121 = vld [vmem:[%s3 + $0x38] sm:$0xff]
    %v122 = vld [vmem:[%s4] sm:$0x1]
    %v124 = vlaneseq
    %v125 = vshrl.u32 %v124, 7
    %v126 = vsub.s32 0, %v125
    %v127 = vrot.slane %v122, %v126
    %vm129 = vcmask 523264
    %v131 = vsel %vm129, %v113, 0
    %133 = vmatprep.subr.mxu0 0.0
    %134 = vmatpush1.msra.mxu0 %v114
    %135 = vmatprep.subr.mxu0 0.0
    %136 = vmatpush1.msra.mxu0 %v115
    %137 = vmatprep.subr.mxu0 0.0
    %138 = vmatpush1.msra.mxu0 %v116
    %139 = vmatprep.subr.mxu0 0.0
    %140 = vmatpush1.msra.mxu0 %v117
    %141 = vmatprep.subr.mxu0 0.0
    %142 = vmatpush1.msra.mxu0 %v118
    %143 = vmatprep.subr.mxu0 0.0
    %144 = vmatpush1.msra.mxu0 %v119
    %145 = vmatprep.subr.mxu0 0.0
    %146 = vmatpush1.msra.mxu0 %v120
    %147 = vmatprep.subr.mxu0 0.0
    %148 = vmatpush1.msra.mxu0 %v121
    %149 = vmatprep.subr.mxu0 0.0
    %150 = vmatpush1.msra.mxu0 0.0
    %151 = vmatprep.subr.mxu0 0.0
    %152 = vmatpush1.msra.mxu0 0.0
    %153 = vmatprep.subr.mxu0 0.0
    %154 = vmatpush1.msra.mxu0 0.0
    %155 = vmatprep.subr.mxu0 0.0
    %156 = vmatpush1.msra.mxu0 0.0
    %157 = vmatprep.subr.mxu0 0.0
    %158 = vmatpush1.msra.mxu0 0.0
    %159 = vmatprep.subr.mxu0 0.0
    %160 = vmatpush1.msra.mxu0 0.0
    %161 = vmatprep.subr.mxu0 0.0
    %162 = vmatpush1.msra.mxu0 0.0
    %163 = vmatprep.subr.mxu0 0.0
    %164 = vmatpush1.msra.mxu0 0.0
    %165 = vmatprep.subr.mxu0 0.0
    %166 = vmatpush1.msra.mxu0 0.0
    %167 = vmatprep.subr.mxu0 0.0
    %168 = vmatpush1.msra.mxu0 0.0
    %169 = vmatprep.subr.mxu0 0.0
    %170 = vmatpush1.msra.mxu0 0.0
    %171 = vmatprep.subr.mxu0 0.0
    %172 = vmatpush1.msra.mxu0 0.0
    %173 = vmatprep.subr.mxu0 0.0
    %174 = vmatpush1.msra.mxu0 0.0
    %175 = vmatprep.subr.mxu0 0.0
    %176 = vmatpush1.msra.mxu0 0.0
    %177 = vmatprep.subr.mxu0 0.0
    %178 = vmatpush1.msra.mxu0 0.0
    %179 = vmatprep.subr.mxu0 0.0
    %180 = vmatpush1.msra.mxu0 0.0
    %181 = vmatprep.subr.mxu0 0.0
    %182 = vmatpush1.msra.mxu0 0.0
    %183 = vmatprep.subr.mxu0 0.0
    %184 = vmatpush1.msra.mxu0 0.0
    %185 = vmatprep.subr.mxu0 0.0
    %186 = vmatpush1.msra.mxu0 0.0
    %187 = vmatprep.subr.mxu0 0.0
    %188 = vmatpush1.msra.mxu0 0.0
    %189 = vmatprep.subr.mxu0 0.0
    %190 = vmatpush1.msra.mxu0 0.0
    %191 = vmatprep.subr.mxu0 0.0
    %192 = vmatpush1.msra.mxu0 0.0
    %193 = vmatprep.subr.mxu0 0.0
    %194 = vmatpush1.msra.mxu0 0.0
    %195 = vmatprep.subr.mxu0 0.0
    %196 = vmatpush1.msra.mxu0 0.0
    %197 = vmatprep.mubr.f32.mxu0 0.0
    %198 = vmatmul.mubr.f32.gmra.mrb[0].mxu0 %v131
    %v199 = vpop.f32.mrb[0].mxu0
    %v200 = vadd.f32 %v127, %v199
    %v201 = vpop.f32.mrb[0].mxu0
    %202 = vdwg.mxu0
    %v203 = vtanh.pop %v200
    %v204 = vld [vmem:[%s5] sm:$0xff]
    %v205 = vld [vmem:[%s5 + $0x8] sm:$0xff]
    %v206 = vld [vmem:[%s5 + $0x10] sm:$0xff]
    %v207 = vld [vmem:[%s5 + $0x18] sm:$0xff]
    %v208 = vld [vmem:[%s5 + $0x20] sm:$0xff]
    %v209 = vld [vmem:[%s5 + $0x28] sm:$0xff]
    %v210 = vld [vmem:[%s6] sm:$0x1]
    %v212 = vlaneseq
    %v213 = vshrl.u32 %v212, 7
    %v214 = vsub.s32 0, %v213
    %v215 = vrot.slane %v210, %v214
    %vm217 = vcmask 392192
    %v219 = vsel %vm217, %v203, 0
    %221 = vmatprep.subr.mxu0 0.0
    %222 = vmatpush1.msra.mxu0 %v204
    %223 = vmatprep.subr.mxu0 0.0
    %224 = vmatpush1.msra.mxu0 %v205
    %225 = vmatprep.subr.mxu0 0.0
    %226 = vmatpush1.msra.mxu0 %v206
    %227 = vmatprep.subr.mxu0 0.0
    %228 = vmatpush1.msra.mxu0 %v207
    %229 = vmatprep.subr.mxu0 0.0
    %230 = vmatpush1.msra.mxu0 %v208
    %231 = vmatprep.subr.mxu0 0.0
    %232 = vmatpush1.msra.mxu0 %v209
    %233 = vmatprep.subr.mxu0 0.0
    %234 = vmatpush1.msra.mxu0 0.0
    %235 = vmatprep.subr.mxu0 0.0
    %236 = vmatpush1.msra.mxu0 0.0
    %237 = vmatprep.subr.mxu0 0.0
    %238 = vmatpush1.msra.mxu0 0.0
    %239 = vmatprep.subr.mxu0 0.0
    %240 = vmatpush1.msra.mxu0 0.0
    %241 = vmatprep.subr.mxu0 0.0
    %242 = vmatpush1.msra.mxu0 0.0
    %243 = vmatprep.subr.mxu0 0.0
    %244 = vmatpush1.msra.mxu0 0.0
    %245 = vmatprep.subr.mxu0 0.0
    %246 = vmatpush1.msra.mxu0 0.0
    %247 = vmatprep.subr.mxu0 0.0
    %248 = vmatpush1.msra.mxu0 0.0
    %249 = vmatprep.subr.mxu0 0.0
    %250 = vmatpush1.msra.mxu0 0.0
    %251 = vmatprep.subr.mxu0 0.0
    %252 = vmatpush1.msra.mxu0 0.0
    %253 = vmatprep.subr.mxu0 0.0
    %254 = vmatpush1.msra.mxu0 0.0
    %255 = vmatprep.subr.mxu0 0.0
    %256 = vmatpush1.msra.mxu0 0.0
    %257 = vmatprep.subr.mxu0 0.0
    %258 = vmatpush1.msra.mxu0 0.0
    %259 = vmatprep.subr.mxu0 0.0
    %260 = vmatpush1.msra.mxu0 0.0
    %261 = vmatprep.subr.mxu0 0.0
    %262 = vmatpush1.msra.mxu0 0.0
    %263 = vmatprep.subr.mxu0 0.0
    %264 = vmatpush1.msra.mxu0 0.0
    %265 = vmatprep.subr.mxu0 0.0
    %266 = vmatpush1.msra.mxu0 0.0
    %267 = vmatprep.subr.mxu0 0.0
    %268 = vmatpush1.msra.mxu0 0.0
    %269 = vmatprep.subr.mxu0 0.0
    %270 = vmatpush1.msra.mxu0 0.0
    %271 = vmatprep.subr.mxu0 0.0
    %272 = vmatpush1.msra.mxu0 0.0
    %273 = vmatprep.subr.mxu0 0.0
    %274 = vmatpush1.msra.mxu0 0.0
    %275 = vmatprep.subr.mxu0 0.0
    %276 = vmatpush1.msra.mxu0 0.0
    %277 = vmatprep.subr.mxu0 0.0
    %278 = vmatpush1.msra.mxu0 0.0
    %279 = vmatprep.subr.mxu0 0.0
    %280 = vmatpush1.msra.mxu0 0.0
    %281 = vmatprep.subr.mxu0 0.0
    %282 = vmatpush1.msra.mxu0 0.0
    %283 = vmatprep.subr.mxu0 0.0
    %284 = vmatpush1.msra.mxu0 0.0
    %285 = vmatprep.mubr.f32.mxu0 0.0
    %286 = vmatmul.mubr.f32.gmra.mrb[0].mxu0 %v219
    %v287 = vpop.f32.mrb[0].mxu0
    %v288 = vadd.f32 %v215, %v287
    %v289 = vpop.f32.mrb[0].mxu0
    %290 = vdwg.mxu0
    %291 = vst.msk [vmem:[#allocation2] sm:$0xff] %vm39, %v288
    // Predicated region
    $region30: #{tpu_custom_call.1} parent=1 // pred_check
      _
    $region31: #{tpu_custom_call.1} parent=1 // pred_check_branch
      %293 = sbr.rel (0) target = $region33
    $region32: #{tpu_custom_call.1} parent=1 // pred_region
      %s295 = ssub.s32 128, 128
      %296 = vsyncadd [#allocation3], %s295
      %s298 = sshll.u32 [#allocation2], 4
      %s299 = int_to_ptr.vmem [resolvable:$true] %s298
      %301 = dma.vmem_to_hbm [thread:$0]  %s299, 128, %s7, [#allocation3]
    $region33: #{tpu_custom_call.1} parent=1 // pred_fallthru
      _
    // Predicated region
    $region34: #{tpu_custom_call.1} parent=1 // pred_check
      _
    $region35: #{tpu_custom_call.1} parent=1 // pred_check_branch
      %303 = sbr.rel (0) target = $region37
    $region36: #{tpu_custom_call.1} parent=1 // pred_region
      %304 = dma.done [#allocation3], 128
    $region37: #{tpu_custom_call.1} parent=1 // pred_fallthru
      _
    %305 = vsyncpa [#allocation3], 1

</llo_original>
